<compile_context>
chip_gen: v7x
topology: tpu7x:2x2x1
jax: 0.10.0
libtpu: 0.0.40
codegen_flags: <defaults>
</compile_context>

<pallas_src>
import jax
import jax.numpy as jnp
from jax.experimental import pallas as pl
from jax.experimental.pallas import tpu as pltpu

INPUT_SIZE = 256   # feature dim of the FSFM embedding net (chosen; multiple of 128 for MXU)
HIDDEN = 128       # fixed by the module definition


def _round_up(x, m):
    return (x + m - 1) // m * m


def _is_two_core_chip():
    """True on 2-TensorCore parts (v7x).  Best-effort; never raises."""
    try:
        kind = jax.devices()[0].device_kind.lower()
        return ("v7" in kind) or ("7x" in kind)
    except Exception:
        return False


def _pick_tile(B, tile_b):
    """Batch tile: big enough to amortize grid-step overhead, >=16 rows for bf16 packing,
    single step for small batches on 1-TC chips, >=2 steps on 2-TC chips (v7x)."""
    tile_b = max(16, _round_up(int(tile_b), 16))
    if B > tile_b:
        return tile_b
    tile = max(16, _round_up(B, 16))
    if _is_two_core_chip() and B > 16:
        tile = max(16, min(tile, _round_up(pl.cdiv(B, 2), 16)))
    return tile


def _mlp_kernel(x_ref, w1_ref, b1_ref, w2_ref, b2_ref, w3_ref, b3_ref, o_ref):
    # Cast to bf16 in-kernel (keeps x's HBM traffic to a single f32 pass in the wrapper).
    x_bf = x_ref[...].astype(jnp.bfloat16)
    # layer1: (TB, D)bf16 @ (D, D)bf16 -> f32 acc; bias + ReLU in f32
    h1 = jnp.dot(x_bf, w1_ref[...], preferred_element_type=jnp.float32)
    h1 = jnp.maximum(h1 + b1_ref[...], 0.0)
    # do1: dropout(p=0.1) -> identity (eval-mode forward)
    # layer2: (TB, D) @ (D, 128)
    h2 = jnp.dot(h1.astype(jnp.bfloat16), w2_ref[...], preferred_element_type=jnp.float32)
    h2 = jnp.maximum(h2 + b2_ref[...], 0.0)
    # do2: dropout(p=0.25) -> identity (eval-mode forward)
    # layer3: (TB, 128) @ (128, 128)
    h3 = jnp.dot(h2.astype(jnp.bfloat16), w3_ref[...], preferred_element_type=jnp.float32)
    h3 = jnp.maximum(h3 + b3_ref[...], 0.0)
    o_ref[...] = h3.astype(o_ref.dtype)


def embedding_net_forward(x, params, *, tile_b=1024, out_dtype=jnp.float32):
    """x: (B, INPUT_SIZE) float32.  Returns (B, 128) in out_dtype.  Handles ragged B via
    Pallas's partial-tail-block masking (no wrapper-side pad)."""
    w1, b1, w2, b2, w3, b3 = params
    B, D = x.shape
    assert D == INPUT_SIZE

    # Weights are tiny (<250 KB total) -> one-time bf16 cast in the wrapper is negligible;
    # they stay resident in VMEM across all grid steps (constant index_map).
    w1b = w1.astype(jnp.bfloat16)
    w2b = w2.astype(jnp.bfloat16)
    w3b = w3.astype(jnp.bfloat16)
    b1f = b1.astype(jnp.float32)
    b2f = b2.astype(jnp.float32)
    b3f = b3.astype(jnp.float32)

    tile_eff = _pick_tile(B, tile_b)
    grid = (pl.cdiv(B, tile_eff),)

    out_bytes = jnp.dtype(out_dtype).itemsize
    flops = 2 * B * (D * D + D * HIDDEN + HIDDEN * HIDDEN)
    bytes_accessed = (
        B * D * 4                                        # x (f32), streamed once
        + (w1b.size + w2b.size + w3b.size) * 2           # weights (bf16), fetched once
        + (b1f.size + b2f.size + b3f.size) * 4           # biases (f32)
        + B * HIDDEN * out_bytes                         # output writeback
    )

    def _resident_spec(shape):
        # Loop-invariant weight/bias block: constant index_map -> fetched once, stays in VMEM.
        return pl.BlockSpec(shape, lambda i: (0, 0))

    out = pl.pallas_call(
        _mlp_kernel,
        out_shape=jax.ShapeDtypeStruct((B, HIDDEN), out_dtype),
        grid_spec=pltpu.PrefetchScalarGridSpec(
            num_scalar_prefetch=0,
            grid=grid,
            in_specs=[
                pl.BlockSpec((tile_eff, D), lambda i: (i, 0)),   # x tile (streamed)
                _resident_spec((D, D)),                          # W1 (in, out)
                _resident_spec((1, D)),                          # b1
                _resident_spec((D, HIDDEN)),                     # W2
                _resident_spec((1, HIDDEN)),                     # b2
                _resident_spec((HIDDEN, HIDDEN)),                # W3
                _resident_spec((1, HIDDEN)),                     # b3
            ],
            out_specs=pl.BlockSpec((tile_eff, HIDDEN), lambda i: (i, 0)),
        ),
        compiler_params=pltpu.CompilerParams(
            dimension_semantics=("parallel",),
            vmem_limit_bytes=32 * 1024 * 1024,   # raises v5e's 16 MiB default for large tiles
        ),
        cost_estimate=pl.CostEstimate(
            flops=flops, transcendentals=0, bytes_accessed=bytes_accessed),
    )(x, w1b, b1f, w2b, b2f, w3b, b3f)

    return out


def init_params(key):
    """Deterministic init matching the nn.Linear shapes of embedding_net.
    PyTorch stores weight as (out, in); we store the transpose (in, out)."""
    k1, k2, k3, k4, k5, k6 = jax.random.split(key, 6)

    def uniform(k, shape, fan_in):
        bound = 1.0 / jnp.sqrt(fan_in)
        return jax.random.uniform(k, shape, jnp.float32, -bound, bound)

    w1 = uniform(k1, (INPUT_SIZE, INPUT_SIZE), INPUT_SIZE)   # layer1.weight.T
    b1 = uniform(k2, (1, INPUT_SIZE), INPUT_SIZE)            # layer1.bias
    w2 = uniform(k3, (INPUT_SIZE, HIDDEN), INPUT_SIZE)       # layer2.weight.T
    b2 = uniform(k4, (1, HIDDEN), INPUT_SIZE)                # layer2.bias
    w3 = uniform(k5, (HIDDEN, HIDDEN), HIDDEN)               # layer3.weight.T
    b3 = uniform(k6, (1, HIDDEN), HIDDEN)                    # layer3.bias
    return (w1, b1, w2, b2, w3, b3)


def reference_forward(x, params):
    """JAX reference with the same bf16 rounding of matmul inputs, f32 accumulation."""
    w1, b1, w2, b2, w3, b3 = params

    def r(a):  # bf16-round then back to f32 (matches kernel operand precision)
        return a.astype(jnp.bfloat16).astype(jnp.float32)

    h = jnp.maximum(r(x) @ r(w1) + b1, 0.0)
    h = jnp.maximum(r(h) @ r(w2) + b2, 0.0)
    h = jnp.maximum(r(h) @ r(w3) + b3, 0.0)
    return h


if __name__ == "__main__":
    key = jax.random.PRNGKey(0)
    kx, kp = jax.random.split(key)

    # Small ragged batch: exercises the partial tail-block path (B=20 -> tile 16/32, ragged tail).
    B = 20
    x = jax.random.normal(kx, (B, INPUT_SIZE), dtype=jnp.float32)
    params = init_params(kp)

    out = embedding_net_forward(x, params)
    out = jax.block_until_ready(out)

    ref = reference_forward(x, params)
    assert out.shape == (B, HIDDEN)
    assert jnp.allclose(out, ref, atol=2e-2, rtol=2e-2), "mismatch vs JAX reference"

    # TODO(synk): dropout (do1/do2) is identity here (eval-mode forward); training-mode
    # stochastic masking would use pltpu.prng_seed / pltpu.prng_random_bits.
    print("KERNEL_OK")
</pallas_src>

<mosaic_0001>
module attributes {stable_mosaic.version = 11 : i64} {
  func.func @_mlp_kernel(%arg0: i32, %arg1: memref<32x256xf32, #tpu.memory_space<vmem>>, %arg2: memref<256x256xbf16, #tpu.memory_space<vmem>>, %arg3: memref<1x256xf32, #tpu.memory_space<vmem>>, %arg4: memref<256x128xbf16, #tpu.memory_space<vmem>>, %arg5: memref<1x128xf32, #tpu.memory_space<vmem>>, %arg6: memref<128x128xbf16, #tpu.memory_space<vmem>>, %arg7: memref<1x128xf32, #tpu.memory_space<vmem>>, %arg8: memref<32x128xf32, #tpu.memory_space<vmem>>) attributes {dimension_semantics = [#tpu.dimension_semantics<parallel>], iteration_bounds = array<i64: 1>, scalar_prefetch = 0 : i64, scratch_operands = 0 : i64, tpu.core_type = #tpu.core_type<tc>, window_params = [{transform_indices = @transform_0, window_bounds = array<i64: 32, 256>}, {pipeline_mode = #tpu.pipeline_mode<synchronous>, transform_indices = @transform_1, window_bounds = array<i64: 256, 256>}, {pipeline_mode = #tpu.pipeline_mode<synchronous>, transform_indices = @transform_2, window_bounds = array<i64: 1, 256>}, {pipeline_mode = #tpu.pipeline_mode<synchronous>, transform_indices = @transform_3, window_bounds = array<i64: 256, 128>}, {pipeline_mode = #tpu.pipeline_mode<synchronous>, transform_indices = @transform_4, window_bounds = array<i64: 1, 128>}, {pipeline_mode = #tpu.pipeline_mode<synchronous>, transform_indices = @transform_5, window_bounds = array<i64: 128, 128>}, {pipeline_mode = #tpu.pipeline_mode<synchronous>, transform_indices = @transform_6, window_bounds = array<i64: 1, 128>}, {transform_indices = @transform_7, window_bounds = array<i64: 32, 128>}]} {
    %c0 = arith.constant 0 : index
    %c0_0 = arith.constant 0 : index
    %0 = vector.load %arg1[%c0, %c0_0] : memref<32x256xf32, #tpu.memory_space<vmem>>, vector<32x256xf32>
    %1 = arith.truncf %0 : vector<32x256xf32> to vector<32x256xbf16>
    %c0_1 = arith.constant 0 : index
    %c0_2 = arith.constant 0 : index
    %2 = vector.load %arg2[%c0_1, %c0_2] : memref<256x256xbf16, #tpu.memory_space<vmem>>, vector<256x256xbf16>
    %cst = arith.constant dense<0.000000e+00> : vector<32x256xf32>
    %3 = tpu.matmul %1, %2, %cst {dimension_numbers = #tpu.dot_dimension_numbers<[1], [0], [0], [1], [0, 0, 1, 1], [], []>} : vector<32x256xbf16>, vector<256x256xbf16>, vector<32x256xf32> -> vector<32x256xf32>
    %c0_3 = arith.constant 0 : index
    %c0_4 = arith.constant 0 : index
    %4 = vector.load %arg3[%c0_3, %c0_4] : memref<1x256xf32, #tpu.memory_space<vmem>>, vector<1x256xf32>
    %5 = vector.broadcast %4 : vector<1x256xf32> to vector<32x256xf32>
    %6 = arith.addf %3, %5 : vector<32x256xf32>
    %cst_5 = arith.constant 0.000000e+00 : f32
    %7 = vector.broadcast %cst_5 : f32 to vector<32x256xf32>
    %8 = arith.maximumf %6, %7 : vector<32x256xf32>
    %9 = arith.truncf %8 : vector<32x256xf32> to vector<32x256xbf16>
    %c0_6 = arith.constant 0 : index
    %c0_7 = arith.constant 0 : index
    %10 = vector.load %arg4[%c0_6, %c0_7] : memref<256x128xbf16, #tpu.memory_space<vmem>>, vector<256x128xbf16>
    %cst_8 = arith.constant dense<0.000000e+00> : vector<32x128xf32>
    %11 = tpu.matmul %9, %10, %cst_8 {dimension_numbers = #tpu.dot_dimension_numbers<[1], [0], [0], [1], [0, 0, 1, 1], [], []>} : vector<32x256xbf16>, vector<256x128xbf16>, vector<32x128xf32> -> vector<32x128xf32>
    %c0_9 = arith.constant 0 : index
    %c0_10 = arith.constant 0 : index
    %12 = vector.load %arg5[%c0_9, %c0_10] : memref<1x128xf32, #tpu.memory_space<vmem>>, vector<1x128xf32>
    %13 = vector.broadcast %12 : vector<1x128xf32> to vector<32x128xf32>
    %14 = arith.addf %11, %13 : vector<32x128xf32>
    %cst_11 = arith.constant 0.000000e+00 : f32
    %15 = vector.broadcast %cst_11 : f32 to vector<32x128xf32>
    %16 = arith.maximumf %14, %15 : vector<32x128xf32>
    %17 = arith.truncf %16 : vector<32x128xf32> to vector<32x128xbf16>
    %c0_12 = arith.constant 0 : index
    %c0_13 = arith.constant 0 : index
    %18 = vector.load %arg6[%c0_12, %c0_13] : memref<128x128xbf16, #tpu.memory_space<vmem>>, vector<128x128xbf16>
    %cst_14 = arith.constant dense<0.000000e+00> : vector<32x128xf32>
    %19 = tpu.matmul %17, %18, %cst_14 {dimension_numbers = #tpu.dot_dimension_numbers<[1], [0], [0], [1], [0, 0, 1, 1], [], []>} : vector<32x128xbf16>, vector<128x128xbf16>, vector<32x128xf32> -> vector<32x128xf32>
    %c0_15 = arith.constant 0 : index
    %c0_16 = arith.constant 0 : index
    %20 = vector.load %arg7[%c0_15, %c0_16] : memref<1x128xf32, #tpu.memory_space<vmem>>, vector<1x128xf32>
    %21 = vector.broadcast %20 : vector<1x128xf32> to vector<32x128xf32>
    %22 = arith.addf %19, %21 : vector<32x128xf32>
    %cst_17 = arith.constant 0.000000e+00 : f32
    %23 = vector.broadcast %cst_17 : f32 to vector<32x128xf32>
    %24 = arith.maximumf %22, %23 : vector<32x128xf32>
    %c0_18 = arith.constant 0 : index
    %c0_19 = arith.constant 0 : index
    %25 = vector.load %arg8[%c0_18, %c0_19] : memref<32x128xf32, #tpu.memory_space<vmem>>, vector<32x128xf32>
    tpu.vector_store %arg8[%c0_18, %c0_19], %24 {strides = array<i32>} : memref<32x128xf32, #tpu.memory_space<vmem>>, vector<32x128xf32>,
    return
  }
  func.func @transform_0(%arg0: i32) -> (i32, i32) {
    %c0_i32 = arith.constant 0 : i32
    %c0_i32_0 = arith.constant 0 : i32
    return %arg0, %c0_i32 : i32, i32
  }
  func.func @transform_1(%arg0: i32) -> (i32, i32) {
    %c0_i32 = arith.constant 0 : i32
    %c0_i32_0 = arith.constant 0 : i32
    %c0_i32_1 = arith.constant 0 : i32
    return %c0_i32, %c0_i32_0 : i32, i32
  }
  func.func @transform_2(%arg0: i32) -> (i32, i32) {
    %c0_i32 = arith.constant 0 : i32
    %c0_i32_0 = arith.constant 0 : i32
    %c0_i32_1 = arith.constant 0 : i32
    return %c0_i32, %c0_i32_0 : i32, i32
  }
  func.func @transform_3(%arg0: i32) -> (i32, i32) {
    %c0_i32 = arith.constant 0 : i32
    %c0_i32_0 = arith.constant 0 : i32
    %c0_i32_1 = arith.constant 0 : i32
    return %c0_i32, %c0_i32_0 : i32, i32
  }
  func.func @transform_4(%arg0: i32) -> (i32, i32) {
    %c0_i32 = arith.constant 0 : i32
    %c0_i32_0 = arith.constant 0 : i32
    %c0_i32_1 = arith.constant 0 : i32
    return %c0_i32, %c0_i32_0 : i32, i32
  }
  func.func @transform_5(%arg0: i32) -> (i32, i32) {
    %c0_i32 = arith.constant 0 : i32
    %c0_i32_0 = arith.constant 0 : i32
    %c0_i32_1 = arith.constant 0 : i32
    return %c0_i32, %c0_i32_0 : i32, i32
  }
  func.func @transform_6(%arg0: i32) -> (i32, i32) {
    %c0_i32 = arith.constant 0 : i32
    %c0_i32_0 = arith.constant 0 : i32
    %c0_i32_1 = arith.constant 0 : i32
    return %c0_i32, %c0_i32_0 : i32, i32
  }
  func.func @transform_7(%arg0: i32) -> (i32, i32) {
    %c0_i32 = arith.constant 0 : i32
    %c0_i32_0 = arith.constant 0 : i32
    return %arg0, %c0_i32 : i32, i32
  }
}

</mosaic_0001>

<llo_original>
// kernel: tpu_custom_call.1
$region0: #{tpu_custom_call.1}
  #allocation0 [shape = 'u32[]', space=smem, size = 0x4, offset = 0x4, fixed_abs, tag = 'smem constant byte address 0x4 - core index']
  #allocation1 [shape = 'u32[144,128]{1,0:T(1,128)}', space=vmem, size = 0x12000, scoped, tag = 'internal scratch']
  %s0 = inlined_call_operand.hbm [shape: f32[20,256], index: 0, kind: input, shape index: {}]
  %s1 = inlined_call_operand.hbm [shape: bf16[256,256], index: 1, kind: input, shape index: {}]
  %s2 = inlined_call_operand.vmem [shape: f32[1,256], index: 2, kind: input, shape index: {}]
  %s3 = inlined_call_operand.hbm [shape: bf16[256,128], index: 3, kind: input, shape index: {}]
  %s4 = inlined_call_operand.vmem [shape: f32[1,128], index: 4, kind: input, shape index: {}]
  %s5 = inlined_call_operand.hbm [shape: bf16[128,128], index: 5, kind: input, shape index: {}]
  %s6 = inlined_call_operand.vmem [shape: f32[1,128], index: 6, kind: input, shape index: {}]
  %s7 = inlined_call_operand.hbm [shape: f32[20,128], index: 7, kind: output, shape index: {}]
  %s8 = sld [smem:[#allocation0]]
  $region54: #{tpu_custom_call.1} parent=0
    _
  %s10 = ssub.s32 1, %s8
  %s11 = scalar_select 0, %s10, %s8
  $region1: #{tpu_custom_call.1} parent=0
    #allocation2 [shape = 'u8[32768]{0}', space=vmem, size = 0x8000, scoped, tag = 'input window, operand 0, single buffered']
    #allocation3 [shape = 's32[1]{0}', space=sflag, size = 0x4, scoped, tag = 'scoped memory for tpu_custom_call.1']
    #allocation4 [shape = 's32[1]{0}', space=sflag, size = 0x4, scoped, tag = 'scoped memory for tpu_custom_call.1']
    #allocation5 [shape = 'u8[131072]{0}', space=vmem, size = 0x20000, scoped, tag = 'input window, operand 1, single buffered']
    #allocation6 [shape = 's32[1]{0}', space=sflag, size = 0x4, scoped, tag = 'scoped memory for tpu_custom_call.1']
    #allocation7 [shape = 'u8[65536]{0}', space=vmem, size = 0x10000, scoped, tag = 'input window, operand 3, single buffered']
    #allocation8 [shape = 'u8[32768]{0}', space=vmem, size = 0x8000, scoped, tag = 'input window, operand 5, single buffered']
    #allocation9 [shape = 's32[1]{0}', space=sflag, size = 0x4, scoped, tag = 'scoped memory for tpu_custom_call.1']
    #allocation10 [shape = 'u8[16384]{0}', space=vmem, size = 0x4000, scoped, tag = 'output window, operand 0, single buffered']
    %12 = vsyncpa [#allocation3], 0
    %13 = vsyncpa [#allocation6], 0
    %14 = vsyncpa [#allocation9], 0
    %15 = vsyncpa [#allocation4], 0
    // Predicated region
    $region2: #{tpu_custom_call.1} parent=1 // pred_check
      _
    $region3: #{tpu_custom_call.1} parent=1 // pred_check_branch
      %17 = sbr.rel (0) target = $region5
    $region4: #{tpu_custom_call.1} parent=1 // pred_region
      %s19 = ssub.s32 1024, 768
      %20 = vsyncadd [#allocation3], %s19
      %s21 = sshll.u32 [#allocation2], 4
      %s22 = int_to_ptr.vmem [resolvable:$true] %s21
      %27 = dma.hbm_to_vmem [thread:$0]  %s0, 768, %s22, [#allocation3], 256, 256, 16
    $region5: #{tpu_custom_call.1} parent=1 // pred_fallthru
      _
    // Predicated region
    $region6: #{tpu_custom_call.1} parent=1 // pred_check
      _
    $region7: #{tpu_custom_call.1} parent=1 // pred_check_branch
      %29 = sbr.rel (0) target = $region9
    $region8: #{tpu_custom_call.1} parent=1 // pred_region
      %s31 = ssub.s32 4096, 4096
      %32 = vsyncadd [#allocation6], %s31
      %s33 = sshll.u32 [#allocation5], 4
      %s34 = int_to_ptr.vmem [resolvable:$true] %s33
      %39 = dma.hbm_to_vmem [thread:$0]  %s1, 4096, %s34, [#allocation6], 128, 128, 8
    $region9: #{tpu_custom_call.1} parent=1 // pred_fallthru
      _
    // Predicated region
    $region10: #{tpu_custom_call.1} parent=1 // pred_check
      _
    $region11: #{tpu_custom_call.1} parent=1 // pred_check_branch
      %41 = sbr.rel (0) target = $region13
    $region12: #{tpu_custom_call.1} parent=1 // pred_region
      _
    $region13: #{tpu_custom_call.1} parent=1 // pred_fallthru
      _
    // Predicated region
    $region14: #{tpu_custom_call.1} parent=1 // pred_check
      _
    $region15: #{tpu_custom_call.1} parent=1 // pred_check_branch
      %43 = sbr.rel (0) target = $region17
    $region16: #{tpu_custom_call.1} parent=1 // pred_region
      %s45 = ssub.s32 2048, 2048
      %46 = vsyncadd [#allocation6], %s45
      %s47 = sshll.u32 [#allocation7], 4
      %s48 = int_to_ptr.vmem [resolvable:$true] %s47
      %53 = dma.hbm_to_vmem [thread:$0]  %s3, 2048, %s48, [#allocation6], 64, 64, 4
    $region17: #{tpu_custom_call.1} parent=1 // pred_fallthru
      _
    // Predicated region
    $region18: #{tpu_custom_call.1} parent=1 // pred_check
      _
    $region19: #{tpu_custom_call.1} parent=1 // pred_check_branch
      %55 = sbr.rel (0) target = $region21
    $region20: #{tpu_custom_call.1} parent=1 // pred_region
      _
    $region21: #{tpu_custom_call.1} parent=1 // pred_fallthru
      _
    // Predicated region
    $region22: #{tpu_custom_call.1} parent=1 // pred_check
      _
    $region23: #{tpu_custom_call.1} parent=1 // pred_check_branch
      %57 = sbr.rel (0) target = $region25
    $region24: #{tpu_custom_call.1} parent=1 // pred_region
      %s59 = ssub.s32 1024, 1024
      %60 = vsyncadd [#allocation9], %s59
      %s61 = sshll.u32 [#allocation8], 4
      %s62 = int_to_ptr.vmem [resolvable:$true] %s61
      %67 = dma.hbm_to_vmem [thread:$0]  %s5, 1024, %s62, [#allocation9], 64, 64, 4
    $region25: #{tpu_custom_call.1} parent=1 // pred_fallthru
      _
    // Predicated region
    $region26: #{tpu_custom_call.1} parent=1 // pred_check
      _
    $region27: #{tpu_custom_call.1} parent=1 // pred_check_branch
      %69 = sbr.rel (0) target = $region29
    $region28: #{tpu_custom_call.1} parent=1 // pred_region
      _
    $region29: #{tpu_custom_call.1} parent=1 // pred_fallthru
      _
    // Predicated region
    $region30: #{tpu_custom_call.1} parent=1 // pred_check
      _
    $region31: #{tpu_custom_call.1} parent=1 // pred_check_branch
      %71 = sbr.rel (0) target = $region33
    $region32: #{tpu_custom_call.1} parent=1 // pred_region
      %72 = dma.done [#allocation3], 1024
    $region33: #{tpu_custom_call.1} parent=1 // pred_fallthru
      _
    // Predicated region
    $region34: #{tpu_custom_call.1} parent=1 // pred_check
      _
    $region35: #{tpu_custom_call.1} parent=1 // pred_check_branch
      %74 = sbr.rel (0) target = $region37
    $region36: #{tpu_custom_call.1} parent=1 // pred_region
      %75 = dma.done [#allocation6], 4096
    $region37: #{tpu_custom_call.1} parent=1 // pred_fallthru
      _
    // Predicated region
    $region38: #{tpu_custom_call.1} parent=1 // pred_check
      _
    $region39: #{tpu_custom_call.1} parent=1 // pred_check_branch
      %77 = sbr.rel (0) target = $region41
    $region40: #{tpu_custom_call.1} parent=1 // pred_region
      %78 = dma.done [#allocation6], 2048
    $region41: #{tpu_custom_call.1} parent=1 // pred_fallthru
      _
    // Predicated region
    $region42: #{tpu_custom_call.1} parent=1 // pred_check
      _
    $region43: #{tpu_custom_call.1} parent=1 // pred_check_branch
      %80 = sbr.rel (0) target = $region45
    $region44: #{tpu_custom_call.1} parent=1 // pred_region
      %81 = dma.done [#allocation9], 1024
    $region45: #{tpu_custom_call.1} parent=1 // pred_fallthru
      _
    %v83 = vld [vmem:[#allocation2] sm:$0xff]
    %v84 = vld [vmem:[#allocation2 + $0x8] sm:$0xff]
    %v85 = vld [vmem:[#allocation2 + $0x10] sm:$0xff]
    %v86 = vld [vmem:[#allocation2 + $0x18] sm:$0xff]
    %v87 = vld [vmem:[#allocation2 + $0x20] sm:$0xff]
    %v88 = vld [vmem:[#allocation2 + $0x28] sm:$0xff]
    %v89 = vld [vmem:[#allocation2 + $0x30] sm:$0xff]
    %v90 = vld [vmem:[#allocation2 + $0x38] sm:$0xff]
    %v91 = vpack.c.bf16 %v85, %v83
    %v92 = vpack.c.bf16 %v86, %v84
    %v93 = vpack.c.bf16 %v89, %v87
    %v94 = vpack.c.bf16 %v90, %v88
    %v95 = vld [vmem:[#allocation5] sm:$0xff]
    %v96 = vld [vmem:[#allocation5 + $0x8] sm:$0xff]
    %v97 = vld [vmem:[#allocation5 + $0x10] sm:$0xff]
    %v98 = vld [vmem:[#allocation5 + $0x18] sm:$0xff]
    %v99 = vld [vmem:[#allocation5 + $0x20] sm:$0xff]
    %v100 = vld [vmem:[#allocation5 + $0x28] sm:$0xff]
    %v101 = vld [vmem:[#allocation5 + $0x30] sm:$0xff]
    %v102 = vld [vmem:[#allocation5 + $0x38] sm:$0xff]
    %v103 = vld [vmem:[#allocation5 + $0x40] sm:$0xff]
    %v104 = vld [vmem:[#allocation5 + $0x48] sm:$0xff]
    %v105 = vld [vmem:[#allocation5 + $0x50] sm:$0xff]
    %v106 = vld [vmem:[#allocation5 + $0x58] sm:$0xff]
    %v107 = vld [vmem:[#allocation5 + $0x60] sm:$0xff]
    %v108 = vld [vmem:[#allocation5 + $0x68] sm:$0xff]
    %v109 = vld [vmem:[#allocation5 + $0x70] sm:$0xff]
    %v110 = vld [vmem:[#allocation5 + $0x78] sm:$0xff]
    %v111 = vld [vmem:[#allocation5 + $0x80] sm:$0xff]
    %v112 = vld [vmem:[#allocation5 + $0x88] sm:$0xff]
    %v113 = vld [vmem:[#allocation5 + $0x90] sm:$0xff]
    %v114 = vld [vmem:[#allocation5 + $0x98] sm:$0xff]
    %v115 = vld [vmem:[#allocation5 + $0xa0] sm:$0xff]
    %v116 = vld [vmem:[#allocation5 + $0xa8] sm:$0xff]
    %v117 = vld [vmem:[#allocation5 + $0xb0] sm:$0xff]
    %v118 = vld [vmem:[#allocation5 + $0xb8] sm:$0xff]
    %v119 = vld [vmem:[#allocation5 + $0xc0] sm:$0xff]
    %v120 = vld [vmem:[#allocation5 + $0xc8] sm:$0xff]
    %v121 = vld [vmem:[#allocation5 + $0xd0] sm:$0xff]
    %v122 = vld [vmem:[#allocation5 + $0xd8] sm:$0xff]
    %v123 = vld [vmem:[#allocation5 + $0xe0] sm:$0xff]
    %v124 = vld [vmem:[#allocation5 + $0xe8] sm:$0xff]
    %v125 = vld [vmem:[#allocation5 + $0xf0] sm:$0xff]
    %v126 = vld [vmem:[#allocation5 + $0xf8] sm:$0xff]
    %v127 = vld [vmem:[%s2] sm:$0x3]
    %v129 = vlaneseq
    %v130 = vshrl.u32 %v129, 7
    %v131 = vsub.s32 0, %v130
    %v132 = vrot.slane %v127, %v131
    %v133 = vlaneseq
    %v134 = vshrl.u32 %v133, 7
    %v135 = vsub.s32 1, %v134
    %v136 = vrot.slane %v127, %v135
    %v171 = vunpack.c.l.b16 %v95
    %v172 = vunpack.c.h.b16 %v95
    %v173 = vunpack.c.l.b16 %v96
    %v174 = vunpack.c.h.b16 %v96
    %v175 = vunpack.c.l.b16 %v97
    %v176 = vunpack.c.h.b16 %v97
    %v177 = vunpack.c.l.b16 %v98
    %v178 = vunpack.c.h.b16 %v98
    %v179 = vunpack.c.l.b16 %v99
    %v180 = vunpack.c.h.b16 %v99
    %v181 = vunpack.c.l.b16 %v100
    %v182 = vunpack.c.h.b16 %v100
    %v183 = vunpack.c.l.b16 %v101
    %v184 = vunpack.c.h.b16 %v101
    %v185 = vunpack.c.l.b16 %v102
    %v186 = vunpack.c.h.b16 %v102
    %v187 = vunpack.c.l.b16 %v103
    %v188 = vunpack.c.h.b16 %v103
    %v189 = vunpack.c.l.b16 %v104
    %v190 = vunpack.c.h.b16 %v104
    %v191 = vunpack.c.l.b16 %v105
    %v192 = vunpack.c.h.b16 %v105
    %v193 = vunpack.c.l.b16 %v106
    %v194 = vunpack.c.h.b16 %v106
    %v195 = vunpack.c.l.b16 %v107
    %v196 = vunpack.c.h.b16 %v107
    %v197 = vunpack.c.l.b16 %v108
    %v198 = vunpack.c.h.b16 %v108
    %v199 = vunpack.c.l.b16 %v109
    %v200 = vunpack.c.h.b16 %v109
    %v201 = vunpack.c.l.b16 %v110
    %v202 = vunpack.c.h.b16 %v110
    %v203 = vunpack.c.l.b16 %v111
    %v204 = vunpack.c.h.b16 %v111
    %v205 = vunpack.c.l.b16 %v112
    %v206 = vunpack.c.h.b16 %v112
    %v207 = vunpack.c.l.b16 %v113
    %v208 = vunpack.c.h.b16 %v113
    %v209 = vunpack.c.l.b16 %v114
    %v210 = vunpack.c.h.b16 %v114
    %v211 = vunpack.c.l.b16 %v115
    %v212 = vunpack.c.h.b16 %v115
    %v213 = vunpack.c.l.b16 %v116
    %v214 = vunpack.c.h.b16 %v116
    %v215 = vunpack.c.l.b16 %v117
    %v216 = vunpack.c.h.b16 %v117
    %v217 = vunpack.c.l.b16 %v118
    %v218 = vunpack.c.h.b16 %v118
    %v219 = vunpack.c.l.b16 %v119
    %v220 = vunpack.c.h.b16 %v119
    %v221 = vunpack.c.l.b16 %v120
    %v222 = vunpack.c.h.b16 %v120
    %v223 = vunpack.c.l.b16 %v121
    %v224 = vunpack.c.h.b16 %v121
    %v225 = vunpack.c.l.b16 %v122
    %v226 = vunpack.c.h.b16 %v122
    %v227 = vunpack.c.l.b16 %v123
    %v228 = vunpack.c.h.b16 %v123
    %v229 = vunpack.c.l.b16 %v124
    %v230 = vunpack.c.h.b16 %v124
    %v231 = vunpack.c.l.b16 %v125
    %v232 = vunpack.c.h.b16 %v125
    %v233 = vunpack.c.l.b16 %v126
    %v234 = vunpack.c.h.b16 %v126
    %v235 = vpack.c.b16 %v173, %v171
    %v236 = vpack.c.b16 %v174, %v172
    %v237 = vpack.c.b16 %v177, %v175
    %v238 = vpack.c.b16 %v178, %v176
    %v239 = vpack.c.b16 %v181, %v179
    %v240 = vpack.c.b16 %v182, %v180
    %v241 = vpack.c.b16 %v185, %v183
    %v242 = vpack.c.b16 %v186, %v184
    %v243 = vpack.c.b16 %v189, %v187
    %v244 = vpack.c.b16 %v190, %v188
    %v245 = vpack.c.b16 %v193, %v191
    %v246 = vpack.c.b16 %v194, %v192
    %v247 = vpack.c.b16 %v197, %v195
    %v248 = vpack.c.b16 %v198, %v196
    %v249 = vpack.c.b16 %v201, %v199
    %v250 = vpack.c.b16 %v202, %v200
    %v251 = vpack.c.b16 %v205, %v203
    %v252 = vpack.c.b16 %v206, %v204
    %v253 = vpack.c.b16 %v209, %v207
    %v254 = vpack.c.b16 %v210, %v208
    %v255 = vpack.c.b16 %v213, %v211
    %v256 = vpack.c.b16 %v214, %v212
    %v257 = vpack.c.b16 %v217, %v215
    %v258 = vpack.c.b16 %v218, %v216
    %v259 = vpack.c.b16 %v221, %v219
    %v260 = vpack.c.b16 %v222, %v220
    %v261 = vpack.c.b16 %v225, %v223
    %v262 = vpack.c.b16 %v226, %v224
    %v263 = vpack.c.b16 %v229, %v227
    %v264 = vpack.c.b16 %v230, %v228
    %v265 = vpack.c.b16 %v233, %v231
    %v266 = vpack.c.b16 %v234, %v232
    %299 = vmatprep.subr.bf16.mxu0 %v236
    %300 = vmatpush1.bf16.msra.mxu0 %v235
    %301 = vmatprep.subr.bf16.mxu0 %v238
    %302 = vmatpush1.bf16.msra.mxu0 %v237
    %303 = vmatprep.subr.bf16.mxu0 %v240
    %304 = vmatpush1.bf16.msra.mxu0 %v239
    %305 = vmatprep.subr.bf16.mxu0 %v242
    %306 = vmatpush1.bf16.msra.mxu0 %v241
    %307 = vmatprep.subr.bf16.mxu0 %v244
    %308 = vmatpush1.bf16.msra.mxu0 %v243
    %309 = vmatprep.subr.bf16.mxu0 %v246
    %310 = vmatpush1.bf16.msra.mxu0 %v245
    %311 = vmatprep.subr.bf16.mxu0 %v248
    %312 = vmatpush1.bf16.msra.mxu0 %v247
    %313 = vmatprep.subr.bf16.mxu0 %v250
    %314 = vmatpush1.bf16.msra.mxu0 %v249
    %315 = vmatprep.subr.bf16.mxu0 %v252
    %316 = vmatpush1.bf16.msra.mxu0 %v251
    %317 = vmatprep.subr.bf16.mxu0 %v254
    %318 = vmatpush1.bf16.msra.mxu0 %v253
    %319 = vmatprep.subr.bf16.mxu0 %v256
    %320 = vmatpush1.bf16.msra.mxu0 %v255
    %321 = vmatprep.subr.bf16.mxu0 %v258
    %322 = vmatpush1.bf16.msra.mxu0 %v257
    %323 = vmatprep.subr.bf16.mxu0 %v260
    %324 = vmatpush1.bf16.msra.mxu0 %v259
    %325 = vmatprep.subr.bf16.mxu0 %v262
    %326 = vmatpush1.bf16.msra.mxu0 %v261
    %327 = vmatprep.subr.bf16.mxu0 %v264
    %328 = vmatpush1.bf16.msra.mxu0 %v263
    %329 = vmatprep.subr.bf16.mxu0 %v266
    %330 = vmatpush1.bf16.msra.mxu0 %v265
    %331 = vmatprep.mubr.bf16.mxu0 %v92
    %332 = vmatmul.mubr.bf16.gmra.mrb[0].mxu0 %v91
    %v333 = vpop.f32.mrb[0].mxu0
    %v334 = vadd.f32 %v132, %v333
    %v335 = vpop.f32.mrb[0].mxu0
    %v336 = vadd.f32 %v136, %v335
    %v337 = vpop.f32.mrb[0].mxu0
    %v338 = vadd.f32 %v132, %v337
    %v339 = vpop.f32.mrb[0].mxu0
    %v340 = vadd.f32 %v136, %v339
    %341 = vmatprep.mubr.bf16.mxu0 %v94
    %342 = vmatmul.mubr.bf16.gmra.mrb[0].mxu0 %v93
    %v343 = vpop.f32.mrb[0].mxu0
    %v344 = vadd.f32 %v132, %v343
    %v345 = vpop.f32.mrb[0].mxu0
    %v346 = vadd.f32 %v136, %v345
    %v347 = vpop.f32.mrb[0].mxu0
    %v348 = vadd.f32 %v132, %v347
    %v349 = vpop.f32.mrb[0].mxu0
    %v350 = vadd.f32 %v136, %v349
    %351 = vdwg.mxu0
    %v352 = vmax.f32 %v334, 0.0
    %v353 = vmax.f32 %v336, 0.0
    %v354 = vmax.f32 %v338, 0.0
    %v355 = vmax.f32 %v340, 0.0
    %v356 = vmax.f32 %v344, 0.0
    %v357 = vmax.f32 %v346, 0.0
    %v358 = vmax.f32 %v348, 0.0
    %v359 = vmax.f32 %v350, 0.0
    %v360 = vpack.c.bf16 %v354, %v352
    %v361 = vpack.c.bf16 %v355, %v353
    %v362 = vpack.c.bf16 %v358, %v356
    %v363 = vpack.c.bf16 %v359, %v357
    %v364 = vld [vmem:[#allocation7] sm:$0xf]
    %v365 = vld [vmem:[#allocation7 + $0x4] sm:$0xf]
    %v366 = vld [vmem:[#allocation7 + $0x8] sm:$0xf]
    %v367 = vld [vmem:[#allocation7 + $0xc] sm:$0xf]
    %v368 = vld [vmem:[#allocation7 + $0x10] sm:$0xf]
    %v369 = vld [vmem:[#allocation7 + $0x14] sm:$0xf]
    %v370 = vld [vmem:[#allocation7 + $0x18] sm:$0xf]
    %v371 = vld [vmem:[#allocation7 + $0x1c] sm:$0xf]
    %v372 = vld [vmem:[#allocation7 + $0x20] sm:$0xf]
    %v373 = vld [vmem:[#allocation7 + $0x24] sm:$0xf]
    %v374 = vld [vmem:[#allocation7 + $0x28] sm:$0xf]
    %v375 = vld [vmem:[#allocation7 + $0x2c] sm:$0xf]
    %v376 = vld [vmem:[#allocation7 + $0x30] sm:$0xf]
    %v377 = vld [vmem:[#allocation7 + $0x34] sm:$0xf]
    %v378 = vld [vmem:[#allocation7 + $0x38] sm:$0xf]
    %v379 = vld [vmem:[#allocation7 + $0x3c] sm:$0xf]
    %v380 = vld [vmem:[#allocation7 + $0x40] sm:$0xf]
    %v381 = vld [vmem:[#allocation7 + $0x44] sm:$0xf]
    %v382 = vld [vmem:[#allocation7 + $0x48] sm:$0xf]
    %v383 = vld [vmem:[#allocation7 + $0x4c] sm:$0xf]
    %v384 = vld [vmem:[#allocation7 + $0x50] sm:$0xf]
    %v385 = vld [vmem:[#allocation7 + $0x54] sm:$0xf]
    %v386 = vld [vmem:[#allocation7 + $0x58] sm:$0xf]
    %v387 = vld [vmem:[#allocation7 + $0x5c] sm:$0xf]
    %v388 = vld [vmem:[#allocation7 + $0x60] sm:$0xf]
    %v389 = vld [vmem:[#allocation7 + $0x64] sm:$0xf]
    %v390 = vld [vmem:[#allocation7 + $0x68] sm:$0xf]
    %v391 = vld [vmem:[#allocation7 + $0x6c] sm:$0xf]
    %v392 = vld [vmem:[#allocation7 + $0x70] sm:$0xf]
    %v393 = vld [vmem:[#allocation7 + $0x74] sm:$0xf]
    %v394 = vld [vmem:[#allocation7 + $0x78] sm:$0xf]
    %v395 = vld [vmem:[#allocation7 + $0x7c] sm:$0xf]
    %v396 = vld [vmem:[%s4] sm:$0x1]
    %v398 = vlaneseq
    %v399 = vshrl.u32 %v398, 7
    %v400 = vsub.s32 0, %v399
    %v401 = vrot.slane %v396, %v400
    %v435 = vunpack.c.l.b16 %v364
    %v436 = vunpack.c.l.b16 %v365
    %v437 = vunpack.c.l.b16 %v366
    %v438 = vunpack.c.l.b16 %v367
    %v439 = vunpack.c.l.b16 %v368
    %v440 = vunpack.c.l.b16 %v369
    %v441 = vunpack.c.l.b16 %v370
    %v442 = vunpack.c.l.b16 %v371
    %v443 = vunpack.c.l.b16 %v372
    %v444 = vunpack.c.l.b16 %v373
    %v445 = vunpack.c.l.b16 %v374
    %v446 = vunpack.c.l.b16 %v375
    %v447 = vunpack.c.l.b16 %v376
    %v448 = vunpack.c.l.b16 %v377
    %v449 = vunpack.c.l.b16 %v378
    %v450 = vunpack.c.l.b16 %v379
    %v451 = vunpack.c.l.b16 %v380
    %v452 = vunpack.c.l.b16 %v381
    %v453 = vunpack.c.l.b16 %v382
    %v454 = vunpack.c.l.b16 %v383
    %v455 = vunpack.c.l.b16 %v384
    %v456 = vunpack.c.l.b16 %v385
    %v457 = vunpack.c.l.b16 %v386
    %v458 = vunpack.c.l.b16 %v387
    %v459 = vunpack.c.l.b16 %v388
    %v460 = vunpack.c.l.b16 %v389
    %v461 = vunpack.c.l.b16 %v390
    %v462 = vunpack.c.l.b16 %v391
    %v463 = vunpack.c.l.b16 %v392
    %v464 = vunpack.c.l.b16 %v393
    %v465 = vunpack.c.l.b16 %v394
    %v466 = vunpack.c.l.b16 %v395
    %v467 = vpack.c.b16 %v436, %v435
    %v468 = vpack.c.b16 %v438, %v437
    %v469 = vpack.c.b16 %v440, %v439
    %v470 = vpack.c.b16 %v442, %v441
    %v471 = vpack.c.b16 %v444, %v443
    %v472 = vpack.c.b16 %v446, %v445
    %v473 = vpack.c.b16 %v448, %v447
    %v474 = vpack.c.b16 %v450, %v449
    %v475 = vpack.c.b16 %v452, %v451
    %v476 = vpack.c.b16 %v454, %v453
    %v477 = vpack.c.b16 %v456, %v455
    %v478 = vpack.c.b16 %v458, %v457
    %v479 = vpack.c.b16 %v460, %v459
    %v480 = vpack.c.b16 %v462, %v461
    %v481 = vpack.c.b16 %v464, %v463
    %v482 = vpack.c.b16 %v466, %v465
    %499 = vmatprep.subr.bf16.mxu0 0
    %500 = vmatpush1.bf16.msra.mxu0 %v467
    %501 = vmatprep.subr.bf16.mxu0 0
    %502 = vmatpush1.bf16.msra.mxu0 %v468
    %503 = vmatprep.subr.bf16.mxu0 0
    %504 = vmatpush1.bf16.msra.mxu0 %v469
    %505 = vmatprep.subr.bf16.mxu0 0
    %506 = vmatpush1.bf16.msra.mxu0 %v470
    %507 = vmatprep.subr.bf16.mxu0 0
    %508 = vmatpush1.bf16.msra.mxu0 %v471
    %509 = vmatprep.subr.bf16.mxu0 0
    %510 = vmatpush1.bf16.msra.mxu0 %v472
    %511 = vmatprep.subr.bf16.mxu0 0
    %512 = vmatpush1.bf16.msra.mxu0 %v473
    %513 = vmatprep.subr.bf16.mxu0 0
    %514 = vmatpush1.bf16.msra.mxu0 %v474
    %515 = vmatprep.subr.bf16.mxu0 0
    %516 = vmatpush1.bf16.msra.mxu0 %v475
    %517 = vmatprep.subr.bf16.mxu0 0
    %518 = vmatpush1.bf16.msra.mxu0 %v476
    %519 = vmatprep.subr.bf16.mxu0 0
    %520 = vmatpush1.bf16.msra.mxu0 %v477
    %521 = vmatprep.subr.bf16.mxu0 0
    %522 = vmatpush1.bf16.msra.mxu0 %v478
    %523 = vmatprep.subr.bf16.mxu0 0
    %524 = vmatpush1.bf16.msra.mxu0 %v479
    %525 = vmatprep.subr.bf16.mxu0 0
    %526 = vmatpush1.bf16.msra.mxu0 %v480
    %527 = vmatprep.subr.bf16.mxu0 0
    %528 = vmatpush1.bf16.msra.mxu0 %v481
    %529 = vmatprep.subr.bf16.mxu0 0
    %530 = vmatpush1.bf16.msra.mxu0 %v482
    %531 = vmatprep.mubr.bf16.mxu0 %v361
    %532 = vmatmul.mubr.bf16.gmra.mrb[0].mxu0 %v360
    %v533 = vpop.f32.mrb[0].mxu0
    %v534 = vadd.f32 %v401, %v533
    %v535 = vpop.f32.mrb[0].mxu0
    %v536 = vpop.f32.mrb[0].mxu0
    %v537 = vadd.f32 %v401, %v536
    %v538 = vpop.f32.mrb[0].mxu0
    %539 = vmatprep.mubr.bf16.mxu0 %v363
    %540 = vmatmul.mubr.bf16.gmra.mrb[0].mxu0 %v362
    %v541 = vpop.f32.mrb[0].mxu0
    %v542 = vadd.f32 %v401, %v541
    %v543 = vpop.f32.mrb[0].mxu0
    %v544 = vpop.f32.mrb[0].mxu0
    %v545 = vadd.f32 %v401, %v544
    %v546 = vpop.f32.mrb[0].mxu0
    %547 = vdwg.mxu0
    %v548 = vmax.f32 %v534, 0.0
    %v549 = vmax.f32 %v537, 0.0
    %v550 = vmax.f32 %v542, 0.0
    %v551 = vmax.f32 %v545, 0.0
    %v552 = vpack.c.bf16 %v549, %v548
    %v553 = vpack.c.bf16 %v551, %v550
    %v554 = vld [vmem:[#allocation8] sm:$0xf]
    %v555 = vld [vmem:[#allocation8 + $0x4] sm:$0xf]
    %v556 = vld [vmem:[#allocation8 + $0x8] sm:$0xf]
    %v557 = vld [vmem:[#allocation8 + $0xc] sm:$0xf]
    %v558 = vld [vmem:[#allocation8 + $0x10] sm:$0xf]
    %v559 = vld [vmem:[#allocation8 + $0x14] sm:$0xf]
    %v560 = vld [vmem:[#allocation8 + $0x18] sm:$0xf]
    %v561 = vld [vmem:[#allocation8 + $0x1c] sm:$0xf]
    %v562 = vld [vmem:[#allocation8 + $0x20] sm:$0xf]
    %v563 = vld [vmem:[#allocation8 + $0x24] sm:$0xf]
    %v564 = vld [vmem:[#allocation8 + $0x28] sm:$0xf]
    %v565 = vld [vmem:[#allocation8 + $0x2c] sm:$0xf]
    %v566 = vld [vmem:[#allocation8 + $0x30] sm:$0xf]
    %v567 = vld [vmem:[#allocation8 + $0x34] sm:$0xf]
    %v568 = vld [vmem:[#allocation8 + $0x38] sm:$0xf]
    %v569 = vld [vmem:[#allocation8 + $0x3c] sm:$0xf]
    %v570 = vld [vmem:[%s6] sm:$0x1]
    %v572 = vlaneseq
    %v573 = vshrl.u32 %v572, 7
    %v574 = vsub.s32 0, %v573
    %v575 = vrot.slane %v570, %v574
    %v593 = vunpack.c.l.b16 %v554
    %v594 = vunpack.c.l.b16 %v555
    %v595 = vunpack.c.l.b16 %v556
    %v596 = vunpack.c.l.b16 %v557
    %v597 = vunpack.c.l.b16 %v558
    %v598 = vunpack.c.l.b16 %v559
    %v599 = vunpack.c.l.b16 %v560
    %v600 = vunpack.c.l.b16 %v561
    %v601 = vunpack.c.l.b16 %v562
    %v602 = vunpack.c.l.b16 %v563
    %v603 = vunpack.c.l.b16 %v564
    %v604 = vunpack.c.l.b16 %v565
    %v605 = vunpack.c.l.b16 %v566
    %v606 = vunpack.c.l.b16 %v567
    %v607 = vunpack.c.l.b16 %v568
    %v608 = vunpack.c.l.b16 %v569
    %v609 = vpack.c.b16 %v594, %v593
    %v610 = vpack.c.b16 %v596, %v595
    %v611 = vpack.c.b16 %v598, %v597
    %v612 = vpack.c.b16 %v600, %v599
    %v613 = vpack.c.b16 %v602, %v601
    %v614 = vpack.c.b16 %v604, %v603
    %v615 = vpack.c.b16 %v606, %v605
    %v616 = vpack.c.b16 %v608, %v607
    %625 = vmatprep.subr.bf16.mxu0 0
    %626 = vmatpush1.bf16.msra.mxu0 %v609
    %627 = vmatprep.subr.bf16.mxu0 0
    %628 = vmatpush1.bf16.msra.mxu0 %v610
    %629 = vmatprep.subr.bf16.mxu0 0
    %630 = vmatpush1.bf16.msra.mxu0 %v611
    %631 = vmatprep.subr.bf16.mxu0 0
    %632 = vmatpush1.bf16.msra.mxu0 %v612
    %633 = vmatprep.subr.bf16.mxu0 0
    %634 = vmatpush1.bf16.msra.mxu0 %v613
    %635 = vmatprep.subr.bf16.mxu0 0
    %636 = vmatpush1.bf16.msra.mxu0 %v614
    %637 = vmatprep.subr.bf16.mxu0 0
    %638 = vmatpush1.bf16.msra.mxu0 %v615
    %639 = vmatprep.subr.bf16.mxu0 0
    %640 = vmatpush1.bf16.msra.mxu0 %v616
    %641 = vmatprep.subr.bf16.mxu0 0
    %642 = vmatpush1.bf16.msra.mxu0 0
    %643 = vmatprep.subr.bf16.mxu0 0
    %644 = vmatpush1.bf16.msra.mxu0 0
    %645 = vmatprep.subr.bf16.mxu0 0
    %646 = vmatpush1.bf16.msra.mxu0 0
    %647 = vmatprep.subr.bf16.mxu0 0
    %648 = vmatpush1.bf16.msra.mxu0 0
    %649 = vmatprep.subr.bf16.mxu0 0
    %650 = vmatpush1.bf16.msra.mxu0 0
    %651 = vmatprep.subr.bf16.mxu0 0
    %652 = vmatpush1.bf16.msra.mxu0 0
    %653 = vmatprep.subr.bf16.mxu0 0
    %654 = vmatpush1.bf16.msra.mxu0 0
    %655 = vmatprep.subr.bf16.mxu0 0
    %656 = vmatpush1.bf16.msra.mxu0 0
    %657 = vmatprep.mubr.bf16.mxu0 0
    %658 = vmatmul.mubr.bf16.gmra.mrb[0].mxu0 %v552
    %v659 = vpop.f32.mrb[0].mxu0
    %v660 = vadd.f32 %v575, %v659
    %v661 = vpop.f32.mrb[0].mxu0
    %v662 = vpop.f32.mrb[0].mxu0
    %v663 = vadd.f32 %v575, %v662
    %v664 = vpop.f32.mrb[0].mxu0
    %665 = vmatprep.mubr.bf16.mxu0 0
    %666 = vmatmul.mubr.bf16.gmra.mrb[0].mxu0 %v553
    %v667 = vpop.f32.mrb[0].mxu0
    %v668 = vadd.f32 %v575, %v667
    %v669 = vpop.f32.mrb[0].mxu0
    %v670 = vpop.f32.mrb[0].mxu0
    %v671 = vadd.f32 %v575, %v670
    %v672 = vpop.f32.mrb[0].mxu0
    %673 = vdwg.mxu0
    %v674 = vmax.f32 %v660, 0.0
    %v675 = vmax.f32 %v663, 0.0
    %v676 = vmax.f32 %v668, 0.0
    %v677 = vmax.f32 %v671, 0.0
    %678 = vst [vmem:[#allocation10] sm:$0xff] %v674
    %679 = vst [vmem:[#allocation10 + $0x8] sm:$0xff] %v675
    %680 = vst [vmem:[#allocation10 + $0x10] sm:$0xff] %v676
    %681 = vst [vmem:[#allocation10 + $0x18] sm:$0xff] %v677
    // Predicated region
    $region46: #{tpu_custom_call.1} parent=1 // pred_check
      _
    $region47: #{tpu_custom_call.1} parent=1 // pred_check_branch
      %683 = sbr.rel (0) target = $region49
    $region48: #{tpu_custom_call.1} parent=1 // pred_region
      %s685 = ssub.s32 512, 384
      %686 = vsyncadd [#allocation4], %s685
      %s687 = sshll.u32 [#allocation10], 4
      %s688 = int_to_ptr.vmem [resolvable:$true] %s687
      %693 = dma.vmem_to_hbm [thread:$0]  %s688, 384, %s7, [#allocation4], 128, 128, 8
    $region49: #{tpu_custom_call.1} parent=1 // pred_fallthru
      _
    // Predicated region
    $region50: #{tpu_custom_call.1} parent=1 // pred_check
      _
    $region51: #{tpu_custom_call.1} parent=1 // pred_check_branch
      %695 = sbr.rel (0) target = $region53
    $region52: #{tpu_custom_call.1} parent=1 // pred_region
      %696 = dma.done [#allocation4], 512
    $region53: #{tpu_custom_call.1} parent=1 // pred_fallthru
      _
    %697 = vsyncpa [#allocation3], 1
    %698 = vsyncpa [#allocation6], 1
    %699 = vsyncpa [#allocation9], 1
    %700 = vsyncpa [#allocation4], 1

</llo_original>
